<compile_context>
chip_gen: v7x
topology: tpu7x:2x2x1
jax: 0.10.0
libtpu: 0.0.40
codegen_flags: <defaults>
</compile_context>

<pallas_src>
import functools

import jax
import jax.numpy as jnp
from jax import lax
from jax.experimental import pallas as pl
from jax.experimental.pallas import tpu as pltpu

ALPHA = 0.8
GAMMA = 3

LANE = 128
PAD_LOGIT = -200.0   # softplus(-200) == 0 in f32 -> inert padding (fl == 0)


def _cdiv(a, b):
    return -(-a // b)


def _round_up(a, b):
    return _cdiv(a, b) * b


def _device_kind():
    try:
        return jax.devices()[0].device_kind.lower()
    except Exception:
        return ""


def _tensorcores_per_chip():
    # v7x exposes 2 TensorCores per device; v5e / v6e have 1.
    return 2 if "7" in _device_kind() else 1


def _max_tile_rows():
    # 4 MiB f32 blocks on v7x (3.2 TB/s HBM -> amortize per-step overhead),
    # 2 MiB elsewhere (2 inputs x 2 pipeline buffers stays well inside VMEM).
    return 8192 if "7" in _device_kind() else 4096


def _vmem_limit_bytes():
    return (48 if "7" in _device_kind() else 32) * 1024 * 1024


def _sublane_multiple(dtype):
    itemsize = jnp.dtype(dtype).itemsize
    if itemsize >= 4:
        return 8
    if itemsize == 2:
        return 16
    return 32


def _focal_loss_kernel(x_ref, t_ref, o_ref, *, alpha, gamma, rows_valid,
                       tile_rows, blocks_needed, tiles_per_core,
                       guard_tail_blocks):
    c = pl.program_id(0)
    i = pl.program_id(1)

    @pl.when(i == 0)
    def _():
        o_ref[...] = jnp.zeros_like(o_ref)

    blk = c * tiles_per_core + i          # logical row-block index

    def compute_and_accumulate():
        x = x_ref[...].astype(jnp.float32)
        t = t_ref[...].astype(jnp.float32)

        # Stable BCE-with-logits: bce = softplus(x) - t*x, clamped at 100 to
        # mirror PyTorch's per-log clamp at -100 (exact for hard {0,1} targets).
        e = jnp.exp(-jnp.abs(x))
        sp = jnp.maximum(x, 0.0) + jnp.log(1.0 + e)
        bce = jnp.minimum(sp - t * x, 100.0)

        m = 1.0 - jnp.exp(-bce)           # 1 - exp(-BCE)

        # (1 - exp(-BCE)) ** gamma: integer powers via repeated multiply (VPU).
        gi = int(gamma)
        if float(gamma) == float(gi) and 1 <= gi <= 8:
            mod = m
            for _ in range(gi - 1):
                mod = mod * m
        elif float(gamma) == 0.0:
            mod = jnp.ones_like(m)
        else:
            mod = m ** gamma

        # alpha*t + (1-alpha)*(1-t)  ==  (1-alpha) + (2*alpha-1)*t
        w = (1.0 - alpha) + (2.0 * alpha - 1.0) * t
        fl = mod * bce * w

        def accumulate(v):
            # Leading-axis reduction only (pure VPU adds, no XLU).
            o_ref[...] += v.reshape(tile_rows // 8, 8, LANE).sum(axis=0)

        if blocks_needed * tile_rows == rows_valid:
            accumulate(fl)                # every block fully in range: no mask
        else:
            row0 = blk * tile_rows

            @pl.when(row0 + tile_rows <= rows_valid)
            def _():
                accumulate(fl)

            @pl.when(row0 + tile_rows > rows_valid)
            def _():
                rid = lax.broadcasted_iota(jnp.int32, (tile_rows, LANE), 0)
                accumulate(jnp.where(rid + row0 < rows_valid, fl, 0.0))

    if guard_tail_blocks:
        pl.when(blk < blocks_needed)(compute_and_accumulate)
    else:
        compute_and_accumulate()


def focal_loss(inputs, targets, alpha=ALPHA, gamma=GAMMA):
    """Scalar focal loss with the same semantics as PyTorch FocalLoss.forward."""
    x = inputs.reshape(-1)
    t = targets.reshape(-1)
    n = x.shape[0]

    # Lane alignment.  n % 128 == 0 -> free reshape (no copy).  Otherwise pad
    # only to the next multiple of 128 with inert values (fl == 0 exactly).
    rem = n % LANE
    if rem:
        # TODO(synk): this rare path still copies both arrays once; a 1-D
        # BlockSpec + lane-level mask would avoid it entirely.
        x = jnp.pad(x, (0, LANE - rem), constant_values=PAD_LOGIT)
        t = jnp.pad(t, (0, LANE - rem), constant_values=0)
    rows = x.shape[0] // LANE
    x2 = x.reshape(rows, LANE)
    t2 = t.reshape(rows, LANE)

    sub = max(_sublane_multiple(x2.dtype), _sublane_multiple(t2.dtype))
    num_cores = _tensorcores_per_chip()
    tile_rows = min(_max_tile_rows(), _round_up(_cdiv(rows, num_cores), sub))
    blocks_needed = _cdiv(rows, tile_rows)
    tiles_per_core = _cdiv(blocks_needed, num_cores)
    guard_tail_blocks = (num_cores * tiles_per_core) != blocks_needed

    kernel = functools.partial(
        _focal_loss_kernel,
        alpha=float(alpha), gamma=float(gamma),
        rows_valid=rows, tile_rows=tile_rows,
        blocks_needed=blocks_needed, tiles_per_core=tiles_per_core,
        guard_tail_blocks=guard_tail_blocks)

    if guard_tail_blocks:
        def in_map(c, i):
            # Clamp logically-out-of-range tail blocks (their compute is
            # skipped in the kernel) so the DMA never walks past the array.
            return (jnp.minimum(c * tiles_per_core + i, blocks_needed - 1), 0)
    else:
        def in_map(c, i):
            return (c * tiles_per_core + i, 0)

    partial_sums = pl.pallas_call(
        kernel,
        out_shape=jax.ShapeDtypeStruct((num_cores, 8, LANE), jnp.float32),
        grid_spec=pltpu.PrefetchScalarGridSpec(
            num_scalar_prefetch=0,
            grid=(num_cores, tiles_per_core),
            in_specs=[
                pl.BlockSpec((tile_rows, LANE), in_map),
                pl.BlockSpec((tile_rows, LANE), in_map),
            ],
            out_specs=pl.BlockSpec((None, 8, LANE), lambda c, i: (c, 0, 0)),
        ),
        compiler_params=pltpu.CompilerParams(
            dimension_semantics=("parallel", "arbitrary"),
            vmem_limit_bytes=_vmem_limit_bytes(),
        ),
    )(x2, t2)

    # One tiny final cross-lane/sublane reduction + mean, done by XLA.
    return jnp.sum(partial_sums) / jnp.float32(n)


def _focal_loss_ref(inputs, targets, alpha=ALPHA, gamma=GAMMA):
    # Direct transcription of the PyTorch module.
    p = jnp.clip(jax.nn.sigmoid(inputs.astype(jnp.float32).reshape(-1)), 0.0, 1.0)
    t = targets.astype(jnp.float32).reshape(-1)
    bce = -(t * jnp.maximum(jnp.log(p), -100.0)
            + (1.0 - t) * jnp.maximum(jnp.log(1.0 - p), -100.0))
    bce_exp = jnp.exp(-bce)
    mod = (1.0 - bce_exp) ** gamma
    fl = alpha * mod * bce * t + (1.0 - alpha) * mod * bce * (1.0 - t)
    return jnp.mean(fl)


if __name__ == "__main__":
    key = jax.random.PRNGKey(0)
    k1, k2 = jax.random.split(key)
    # NCHW logits and binary targets (same layout as the PyTorch module).
    inputs = jax.random.normal(k1, (2, 4, 16, 16), dtype=jnp.float32)
    targets = (jax.random.uniform(k2, (2, 4, 16, 16)) > 0.5).astype(jnp.float32)

    loss = jax.block_until_ready(jax.jit(focal_loss)(inputs, targets))
    ref = jax.block_until_ready(_focal_loss_ref(inputs, targets))
    assert jnp.allclose(loss, ref, rtol=1e-5, atol=1e-6), (loss, ref)
    print("KERNEL_OK")
</pallas_src>

<mosaic_0001>
module attributes {stable_mosaic.version = 11 : i64} {
  func.func @_focal_loss_kernel(%arg0: i32, %arg1: i32, %arg2: memref<16x128xf32, #tpu.memory_space<vmem>>, %arg3: memref<16x128xf32, #tpu.memory_space<vmem>>, %arg4: memref<1x8x128xf32, #tpu.memory_space<vmem>>) attributes {dimension_semantics = [#tpu.dimension_semantics<parallel>, #tpu.dimension_semantics<arbitrary>], iteration_bounds = array<i64: 1, 1>, scalar_prefetch = 0 : i64, scratch_operands = 0 : i64, tpu.core_type = #tpu.core_type<tc>, window_params = [{transform_indices = @transform_0, window_bounds = array<i64: 16, 128>}, {transform_indices = @transform_1, window_bounds = array<i64: 16, 128>}, {transform_indices = @transform_2, window_bounds = array<i64: 1, 8, 128>}]} {
    %c0_i32 = arith.constant 0 : i32
    %0 = arith.cmpi eq, %arg1, %c0_i32 : i32
    %1 = arith.extui %0 : i1 to i32
    %c0_i32_0 = arith.constant 0 : i32
    %2 = arith.cmpi ne, %1, %c0_i32_0 : i32
    scf.if %2 {
      %cst_18 = arith.constant 0.000000e+00 : f32
      %40 = vector.broadcast %cst_18 : f32 to vector<8x128xf32>
      %c0_19 = arith.constant 0 : index
      %c0_20 = arith.constant 0 : index
      %c0_21 = arith.constant 0 : index
      %41 = vector.load %arg4[%c0_19, %c0_20, %c0_21] : memref<1x8x128xf32, #tpu.memory_space<vmem>>, vector<1x8x128xf32>
      %42 = vector.shape_cast %41 : vector<1x8x128xf32> to vector<8x128xf32>
      %43 = vector.shape_cast %40 : vector<8x128xf32> to vector<1x8x128xf32>
      tpu.vector_store %arg4[%c0_19, %c0_20, %c0_21], %43 {strides = array<i32>} : memref<1x8x128xf32, #tpu.memory_space<vmem>>, vector<1x8x128xf32>,
    } else {
    }
    %c0 = arith.constant 0 : index
    %c0_1 = arith.constant 0 : index
    %3 = vector.load %arg2[%c0, %c0_1] : memref<16x128xf32, #tpu.memory_space<vmem>>, vector<16x128xf32>
    %c0_2 = arith.constant 0 : index
    %c0_3 = arith.constant 0 : index
    %4 = vector.load %arg3[%c0_2, %c0_3] : memref<16x128xf32, #tpu.memory_space<vmem>>, vector<16x128xf32>
    %5 = math.absf %3 : vector<16x128xf32>
    %cst = arith.constant 0.000000e+00 : f32
    %6 = vector.broadcast %cst : f32 to vector<16x128xf32>
    %7 = arith.subf %6, %5 : vector<16x128xf32>
    %8 = math.exp %7 : vector<16x128xf32>
    %cst_4 = arith.constant 0.000000e+00 : f32
    %9 = vector.broadcast %cst_4 : f32 to vector<16x128xf32>
    %10 = arith.maximumf %3, %9 : vector<16x128xf32>
    %cst_5 = arith.constant 1.000000e+00 : f32
    %11 = vector.broadcast %cst_5 : f32 to vector<16x128xf32>
    %12 = arith.addf %11, %8 : vector<16x128xf32>
    %13 = math.log %12 : vector<16x128xf32>
    %14 = arith.addf %10, %13 : vector<16x128xf32>
    %15 = arith.mulf %4, %3 : vector<16x128xf32>
    %16 = arith.subf %14, %15 : vector<16x128xf32>
    %cst_6 = arith.constant 1.000000e+02 : f32
    %17 = vector.broadcast %cst_6 : f32 to vector<16x128xf32>
    %18 = arith.minimumf %16, %17 : vector<16x128xf32>
    %cst_7 = arith.constant 0.000000e+00 : f32
    %19 = vector.broadcast %cst_7 : f32 to vector<16x128xf32>
    %20 = arith.subf %19, %18 : vector<16x128xf32>
    %21 = math.exp %20 : vector<16x128xf32>
    %cst_8 = arith.constant 1.000000e+00 : f32
    %22 = vector.broadcast %cst_8 : f32 to vector<16x128xf32>
    %23 = arith.subf %22, %21 : vector<16x128xf32>
    %24 = arith.mulf %23, %23 : vector<16x128xf32>
    %25 = arith.mulf %24, %23 : vector<16x128xf32>
    %cst_9 = arith.constant 6.000000e-01 : f32
    %26 = vector.broadcast %cst_9 : f32 to vector<16x128xf32>
    %27 = arith.mulf %26, %4 : vector<16x128xf32>
    %cst_10 = arith.constant 2.000000e-01 : f32
    %28 = vector.broadcast %cst_10 : f32 to vector<16x128xf32>
    %29 = arith.addf %28, %27 : vector<16x128xf32>
    %30 = arith.mulf %25, %18 : vector<16x128xf32>
    %31 = arith.mulf %30, %29 : vector<16x128xf32>
    %c0_11 = arith.constant 0 : index
    %c0_12 = arith.constant 0 : index
    %c0_13 = arith.constant 0 : index
    %32 = vector.load %arg4[%c0_11, %c0_12, %c0_13] : memref<1x8x128xf32, #tpu.memory_space<vmem>>, vector<1x8x128xf32>
    %33 = vector.shape_cast %32 : vector<1x8x128xf32> to vector<8x128xf32>
    %34 = vector.shape_cast %31 : vector<16x128xf32> to vector<2x8x128xf32>
    %cst_14 = arith.constant dense<0.000000e+00> : vector<8x128xf32>
    %35 = vector.multi_reduction <add>, %34, %cst_14 [0] : vector<2x8x128xf32> to vector<8x128xf32>
    %36 = arith.addf %33, %35 : vector<8x128xf32>
    %c0_15 = arith.constant 0 : index
    %c0_16 = arith.constant 0 : index
    %c0_17 = arith.constant 0 : index
    %37 = vector.load %arg4[%c0_15, %c0_16, %c0_17] : memref<1x8x128xf32, #tpu.memory_space<vmem>>, vector<1x8x128xf32>
    %38 = vector.shape_cast %37 : vector<1x8x128xf32> to vector<8x128xf32>
    %39 = vector.shape_cast %36 : vector<8x128xf32> to vector<1x8x128xf32>
    tpu.vector_store %arg4[%c0_15, %c0_16, %c0_17], %39 {strides = array<i32>} : memref<1x8x128xf32, #tpu.memory_space<vmem>>, vector<1x8x128xf32>,
    return
  }
  func.func @transform_0(%arg0: i32, %arg1: i32) -> (i32, i32) {
    %c1_i32 = arith.constant 1 : i32
    %0 = arith.muli %arg0, %c1_i32 : i32
    %1 = arith.addi %0, %arg1 : i32
    %c0_i32 = arith.constant 0 : i32
    %c0_i32_0 = arith.constant 0 : i32
    return %1, %c0_i32 : i32, i32
  }
  func.func @transform_1(%arg0: i32, %arg1: i32) -> (i32, i32) {
    %c1_i32 = arith.constant 1 : i32
    %0 = arith.muli %arg0, %c1_i32 : i32
    %1 = arith.addi %0, %arg1 : i32
    %c0_i32 = arith.constant 0 : i32
    %c0_i32_0 = arith.constant 0 : i32
    return %1, %c0_i32 : i32, i32
  }
  func.func @transform_2(%arg0: i32, %arg1: i32) -> (i32, i32, i32) {
    %c0_i32 = arith.constant 0 : i32
    %c0_i32_0 = arith.constant 0 : i32
    %c0_i32_1 = arith.constant 0 : i32
    return %arg0, %c0_i32, %c0_i32_0 : i32, i32, i32
  }
}

</mosaic_0001>

<llo_original>
// kernel: focal_loss.1
$region0: #{focal_loss.1}
  #allocation0 [shape = 'u32[]', space=smem, size = 0x4, offset = 0x4, fixed_abs, tag = 'smem constant byte address 0x4 - core index']
  #allocation1 [shape = 'u32[144,128]{1,0:T(1,128)}', space=vmem, size = 0x12000, scoped, tag = 'internal scratch']
  %s0 = inlined_call_operand.vmem [shape: f32[16,128], index: 0, kind: input, shape index: {}]
  %s1 = inlined_call_operand.vmem [shape: f32[16,128], index: 1, kind: input, shape index: {}]
  %s2 = inlined_call_operand.vmem [shape: f32[1,8,128], index: 2, kind: output, shape index: {}]
  %s3 = sld [smem:[#allocation0]]
  $region22: #{focal_loss.1} parent=0
    _
  %s5 = ssub.s32 1, %s3
  %s6 = scalar_select 0, %s5, %s3
  // Predicated region
  $region2: #{focal_loss.1} parent=0 // pred_check
    _
  $region3: #{focal_loss.1} parent=0 // pred_check_branch
    %8 = sbr.rel (0) target = $region5
  $region4: #{focal_loss.1} parent=0 // pred_region
    %s9 = sadd.s32 0, 0
    %s10 = smul.u32 2, %s9
    %p11 = scmp.lt.s32.totalorder %s10, 1
    %s12 = scalar_select %p11, %s10, 1
    %s13 = smul.addr %s12, 8
    %s14 = scalar_lea.vmem %s0, %s13
    %s15 = sadd.s32 0, 0
    %s16 = smul.u32 2, %s15
  $region5: #{focal_loss.1} parent=0 // pred_fallthru
    _
  // Predicated region
  $region6: #{focal_loss.1} parent=0 // pred_check
    _
  $region7: #{focal_loss.1} parent=0 // pred_check_branch
    %18 = sbr.rel (0) target = $region9
  $region8: #{focal_loss.1} parent=0 // pred_region
    %s19 = sadd.s32 0, 0
    %s20 = smul.u32 2, %s19
    %p21 = scmp.lt.s32.totalorder %s20, 1
    %s22 = scalar_select %p21, %s20, 1
    %s23 = smul.addr %s22, 8
    %s24 = scalar_lea.vmem %s1, %s23
    %s25 = sadd.s32 0, 0
    %s26 = smul.u32 2, %s25
  $region9: #{focal_loss.1} parent=0 // pred_fallthru
    _
  %s27 = sadd.s32 0, 0
  %s28 = smul.u32 2, %s27
  %p29 = scmp.lt.s32.totalorder %s28, 1
  %s30 = scalar_select %p29, %s28, 1
  %s31 = smul.addr %s30, 8
  %s32 = scalar_lea.vmem %s0, %s31
  %s33 = sadd.s32 0, 0
  %s34 = smul.u32 2, %s33
  %p35 = scmp.lt.s32.totalorder %s34, 1
  %s36 = scalar_select %p35, %s34, 1
  %s37 = smul.addr %s36, 8
  %s38 = scalar_lea.vmem %s1, %s37
  %s39 = sadd.s32 0, 0
  %s40 = smul.u32 2, %s39
  %p41 = scmp.lt.s32.totalorder %s40, 1
  %s42 = scalar_select %p41, %s40, 1
  %s43 = smul.addr %s42, 8
  %s44 = scalar_lea.vmem %s0, %s43
  %s45 = sadd.s32 0, 0
  %s46 = smul.u32 2, %s45
  %s47 = sadd.s32 0, 0
  %s48 = smul.u32 2, %s47
  %p49 = scmp.lt.s32.totalorder %s48, 1
  %s50 = scalar_select %p49, %s48, 1
  %s51 = smul.addr %s50, 8
  %s52 = scalar_lea.vmem %s1, %s51
  %s53 = sadd.s32 0, 0
  %s54 = smul.u32 2, %s53
  %p55 = scmp.eq.s32.totalorder 0, 0
  // Predicated region
  $region10: #{focal_loss.1} parent=0 // pred_check
    %p56 = pneg %p55
  $region11: #{focal_loss.1} parent=0 // pred_check_branch
    %58 = sbr.rel (%p56) target = $region13
  $region12: #{focal_loss.1} parent=0 // pred_region
    %59 = vst [vmem:[%s2] sm:$0xff] 0.0
  $region13: #{focal_loss.1} parent=0 // pred_fallthru
    _
  %v60 = vld [vmem:[%s44] sm:$0xff]
  %v61 = vld [vmem:[%s44 + $0x8] sm:$0xff]
  %v62 = vld [vmem:[%s52] sm:$0xff]
  %v63 = vld [vmem:[%s52 + $0x8] sm:$0xff]
  %v64 = vand.u32 2147483647, %v60
  %v65 = vand.u32 2147483647, %v61
  %v66 = vsub.f32 0.0, %v64
  %v67 = vsub.f32 0.0, %v65
  %v68 = vmul.f32 %v66, 1.442695
  %v69 = vpow.pop %v68
  %v70 = vmul.f32 %v67, 1.442695
  %v71 = vpow.pop %v70
  %v72 = vmax.f32 %v60, 0.0
  %v73 = vmax.f32 %v61, 0.0
  %v74 = vadd.f32 %v69, 1.0
  %v75 = vadd.f32 %v71, 1.0
  %v76 = vlog2.pop %v74
  %v77 = vmul.f32 %v76, 0.6931472
  %v78 = vlog2.pop %v75
  %v79 = vmul.f32 %v78, 0.6931472
  %v80 = vadd.f32 %v72, %v77
  %v81 = vadd.f32 %v73, %v79
  %v82 = vmul.f32 %v62, %v60
  %v83 = vmul.f32 %v63, %v61
  %v84 = vsub.f32 %v80, %v82
  %v85 = vsub.f32 %v81, %v83
  %v86 = vmin.f32 %v84, 100.0
  %v87 = vmin.f32 %v85, 100.0
  %v88 = vsub.f32 0.0, %v86
  %v89 = vsub.f32 0.0, %v87
  %v90 = vmul.f32 %v88, 1.442695
  %v91 = vpow.pop %v90
  %v92 = vmul.f32 %v89, 1.442695
  %v93 = vpow.pop %v92
  %v94 = vsub.f32 1.0, %v91
  %v95 = vsub.f32 1.0, %v93
  %v96 = vmul.f32 %v94, %v94
  %v97 = vmul.f32 %v95, %v95
  %v98 = vmul.f32 %v96, %v94
  %v99 = vmul.f32 %v97, %v95
  %v100 = vmul.f32 %v62, 0.6
  %v101 = vmul.f32 %v63, 0.6
  %v102 = vadd.f32 %v100, 0.2
  %v103 = vadd.f32 %v101, 0.2
  %v104 = vmul.f32 %v98, %v86
  %v105 = vmul.f32 %v99, %v87
  %v106 = vmul.f32 %v104, %v102
  %v107 = vmul.f32 %v105, %v103
  %v108 = vld [vmem:[%s2] sm:$0xff]
  %v109 = vadd.f32 %v106, %v107
  %v110 = vadd.f32 %v108, %v109
  %111 = vst [vmem:[%s2] sm:$0xff] %v110
  // Predicated region
  $region14: #{focal_loss.1} parent=0 // pred_check
    _
  $region15: #{focal_loss.1} parent=0 // pred_check_branch
    %113 = sbr.rel (0) target = $region17
  $region16: #{focal_loss.1} parent=0 // pred_region
    _
  $region17: #{focal_loss.1} parent=0 // pred_fallthru
    _
  // Predicated region
  $region18: #{focal_loss.1} parent=0 // pred_check
    _
  $region19: #{focal_loss.1} parent=0 // pred_check_branch
    %115 = sbr.rel (0) target = $region21
  $region20: #{focal_loss.1} parent=0 // pred_region
    _
  $region21: #{focal_loss.1} parent=0 // pred_fallthru
    _

</llo_original>
